<compile_context>
chip_gen: v5e
topology: v5e:2x2
jax: 0.10.0
libtpu: 0.0.40
codegen_flags: <defaults>
</compile_context>

<pallas_src>
import jax
import jax.numpy as jnp
from jax.experimental import pallas as pl
from jax.experimental.pallas import tpu as pltpu


def _senet_kernel(x_ref, w1t_ref, b1_ref, w2t_ref, b2_ref, o_ref):
    # x_ref  : (B_TILE, C, HW_pad)   tile of batch elements (spatial flattened)
    # w1t_ref: (C, C_red)            fc1 weight, transposed, pre-scaled by 1/HW
    # b1_ref : (1, C_red)
    # w2t_ref: (C_red, C)            fc2 weight, transposed
    # b2_ref : (1, C)
    x = x_ref[...]                                            # (Bt, C, HWp)

    # squeeze: spatial sum in f32 (1/HW already folded into w1t; padded lanes
    # are zero so they contribute nothing).
    pooled = jnp.sum(x.astype(jnp.float32), axis=2)           # (Bt, C)

    # excitation, batched across the whole tile.
    h = jnp.dot(pooled, w1t_ref[...],
                preferred_element_type=jnp.float32) + b1_ref[...]   # (Bt, C_red)
    h = jnp.maximum(h, 0.0)
    s = jnp.dot(h, w2t_ref[...],
                preferred_element_type=jnp.float32) + b2_ref[...]   # (Bt, C)
    s = jax.nn.sigmoid(s)

    # rescale: per-(batch, channel) scale broadcast over lanes.
    o_ref[...] = (x * s.astype(x.dtype)[:, :, None]).astype(o_ref.dtype)


def senet_forward(x, w1, b1, w2, b2, *, max_block_bytes=4 << 20):
    """x: (B, C, H, W).  w1: (C_red, C), b1: (C_red,), w2: (C, C_red), b2: (C,)."""
    B, C, H, W = x.shape
    C_red = w1.shape[0]
    HW = H * W

    # Lane-dense last dim: pad flattened spatial to a multiple of 128.
    HW_pad = ((HW + 127) // 128) * 128

    # Pick a batch tile so each block is a few MiB (v7x-safe), but keep >=2
    # grid steps when possible so the parallel axis feeds both v7x TensorCores.
    itemsize = jnp.dtype(x.dtype).itemsize
    per_elem_bytes = C * HW_pad * itemsize
    b_tile = max(1, min(B, max_block_bytes // max(per_elem_bytes, 1)))
    if b_tile >= B and B >= 2:
        b_tile = pl.cdiv(B, 2)
    B_pad = pl.cdiv(B, b_tile) * b_tile

    x_flat = x.reshape(B, C, HW)
    if HW_pad != HW or B_pad != B:
        x_flat = jnp.pad(x_flat, ((0, B_pad - B), (0, 0), (0, HW_pad - HW)))

    # Fold the 1/HW of the global average pool into the fc1 weight (once, here),
    # and pre-transpose both weights so the kernel does row-major (Bt,C)@(C,Cr).
    w1t = (w1 * (1.0 / float(HW))).T.astype(jnp.float32)        # (C, C_red)
    w2t = w2.T.astype(jnp.float32)                              # (C_red, C)
    b1_row = b1.reshape(1, C_red).astype(jnp.float32)
    b2_row = b2.reshape(1, C).astype(jnp.float32)

    block_bytes = b_tile * per_elem_bytes
    # input + output blocks, each double-buffered, plus weights and headroom.
    vmem_limit = int(min(64 << 20, max(16 << 20, 4 * block_bytes + (2 << 20))))

    grid = (B_pad // b_tile,)
    out_flat = pl.pallas_call(
        _senet_kernel,
        out_shape=jax.ShapeDtypeStruct((B_pad, C, HW_pad), x.dtype),
        grid_spec=pltpu.PrefetchScalarGridSpec(
            num_scalar_prefetch=0,
            grid=grid,
            in_specs=[
                pl.BlockSpec((b_tile, C, HW_pad), lambda b: (b, 0, 0)),
                pl.BlockSpec((C, C_red), lambda b: (0, 0)),
                pl.BlockSpec((1, C_red), lambda b: (0, 0)),
                pl.BlockSpec((C_red, C), lambda b: (0, 0)),
                pl.BlockSpec((1, C), lambda b: (0, 0)),
            ],
            out_specs=pl.BlockSpec((b_tile, C, HW_pad), lambda b: (b, 0, 0)),
        ),
        compiler_params=pltpu.CompilerParams(
            dimension_semantics=("parallel",),
            vmem_limit_bytes=vmem_limit),
    )(x_flat, w1t, b1_row, w2t, b2_row)

    return out_flat[:B, :, :HW].reshape(B, C, H, W)


def senet_reference(x, w1, b1, w2, b2):
    """Plain-JAX reference matching the PyTorch forward."""
    pooled = jnp.mean(x, axis=(2, 3))                            # (B, C)
    h = jnp.maximum(pooled @ w1.T + b1, 0.0)                     # (B, C_red)
    s = jax.nn.sigmoid(h @ w2.T + b2)                            # (B, C)
    return x * s[:, :, None, None]


def _run_case(key, B, inplanes, reduction, H, W):
    hidden = inplanes // reduction
    kx, kw1, kb1, kw2, kb2 = jax.random.split(key, 5)

    x = jax.random.normal(kx, (B, inplanes, H, W), dtype=jnp.float32)
    # Deterministic init mimicking normal_init(std=0.01) on the 1x1 convs.
    w1 = 0.01 * jax.random.normal(kw1, (hidden, inplanes), dtype=jnp.float32)
    b1 = 0.01 * jax.random.normal(kb1, (hidden,), dtype=jnp.float32)
    w2 = 0.01 * jax.random.normal(kw2, (inplanes, hidden), dtype=jnp.float32)
    b2 = 0.01 * jax.random.normal(kb2, (inplanes,), dtype=jnp.float32)

    out = jax.block_until_ready(senet_forward(x, w1, b1, w2, b2))
    ref = senet_reference(x, w1, b1, w2, b2)
    assert out.shape == x.shape
    assert jnp.allclose(out, ref, atol=1e-5, rtol=1e-5), "mismatch vs reference"


if __name__ == "__main__":
    key = jax.random.PRNGKey(0)
    k1, k2 = jax.random.split(key)

    # Module config: SENet(inplanes=64, reduction=16, bias=True).
    # Aligned case: HW = 256 (already a multiple of 128).
    _run_case(k1, B=2, inplanes=64, reduction=16, H=16, W=16)
    # Unaligned case: HW = 49 -> padded to 128; B=3 -> padded batch tile.
    _run_case(k2, B=3, inplanes=64, reduction=16, H=7, W=7)

    print("KERNEL_OK")
</pallas_src>

<mosaic_0001>
module attributes {stable_mosaic.version = 11 : i64} {
  func.func @_senet_kernel(%arg0: i32, %arg1: memref<1x64x256xf32, #tpu.memory_space<vmem>>, %arg2: memref<64x4xf32, #tpu.memory_space<vmem>>, %arg3: memref<1x4xf32, #tpu.memory_space<vmem>>, %arg4: memref<4x64xf32, #tpu.memory_space<vmem>>, %arg5: memref<1x64xf32, #tpu.memory_space<vmem>>, %arg6: memref<1x64x256xf32, #tpu.memory_space<vmem>>) attributes {dimension_semantics = [#tpu.dimension_semantics<parallel>], iteration_bounds = array<i64: 2>, scalar_prefetch = 0 : i64, scratch_operands = 0 : i64, tpu.core_type = #tpu.core_type<tc>, window_params = [{transform_indices = @transform_0, window_bounds = array<i64: 1, 64, 256>}, {pipeline_mode = #tpu.pipeline_mode<synchronous>, transform_indices = @transform_1, window_bounds = array<i64: 64, 4>}, {pipeline_mode = #tpu.pipeline_mode<synchronous>, transform_indices = @transform_2, window_bounds = array<i64: 1, 4>}, {pipeline_mode = #tpu.pipeline_mode<synchronous>, transform_indices = @transform_3, window_bounds = array<i64: 4, 64>}, {pipeline_mode = #tpu.pipeline_mode<synchronous>, transform_indices = @transform_4, window_bounds = array<i64: 1, 64>}, {transform_indices = @transform_5, window_bounds = array<i64: 1, 64, 256>}]} {
    %c0 = arith.constant 0 : index
    %c0_0 = arith.constant 0 : index
    %c0_1 = arith.constant 0 : index
    %0 = vector.load %arg1[%c0, %c0_0, %c0_1] : memref<1x64x256xf32, #tpu.memory_space<vmem>>, vector<1x64x256xf32>
    %cst = arith.constant dense<0.000000e+00> : vector<1x64xf32>
    %1 = vector.multi_reduction <add>, %0, %cst [2] : vector<1x64x256xf32> to vector<1x64xf32>
    %c0_2 = arith.constant 0 : index
    %c0_3 = arith.constant 0 : index
    %2 = vector.load %arg2[%c0_2, %c0_3] : memref<64x4xf32, #tpu.memory_space<vmem>>, vector<64x4xf32>
    %cst_4 = arith.constant dense<0.000000e+00> : vector<1x4xf32>
    %3 = tpu.matmul %1, %2, %cst_4 {dimension_numbers = #tpu.dot_dimension_numbers<[1], [0], [0], [1], [0, 0, 1, 1], [], []>} : vector<1x64xf32>, vector<64x4xf32>, vector<1x4xf32> -> vector<1x4xf32>
    %c0_5 = arith.constant 0 : index
    %c0_6 = arith.constant 0 : index
    %4 = vector.load %arg3[%c0_5, %c0_6] : memref<1x4xf32, #tpu.memory_space<vmem>>, vector<1x4xf32>
    %5 = arith.addf %3, %4 : vector<1x4xf32>
    %cst_7 = arith.constant 0.000000e+00 : f32
    %6 = vector.broadcast %cst_7 : f32 to vector<1x4xf32>
    %7 = arith.maximumf %5, %6 : vector<1x4xf32>
    %c0_8 = arith.constant 0 : index
    %c0_9 = arith.constant 0 : index
    %8 = vector.load %arg4[%c0_8, %c0_9] : memref<4x64xf32, #tpu.memory_space<vmem>>, vector<4x64xf32>
    %cst_10 = arith.constant dense<0.000000e+00> : vector<1x64xf32>
    %9 = tpu.matmul %7, %8, %cst_10 {dimension_numbers = #tpu.dot_dimension_numbers<[1], [0], [0], [1], [0, 0, 1, 1], [], []>} : vector<1x4xf32>, vector<4x64xf32>, vector<1x64xf32> -> vector<1x64xf32>
    %c0_11 = arith.constant 0 : index
    %c0_12 = arith.constant 0 : index
    %10 = vector.load %arg5[%c0_11, %c0_12] : memref<1x64xf32, #tpu.memory_space<vmem>>, vector<1x64xf32>
    %11 = arith.addf %9, %10 : vector<1x64xf32>
    %12 = arith.negf %11 : vector<1x64xf32>
    %13 = math.exp %12 : vector<1x64xf32>
    %cst_13 = arith.constant 1.000000e+00 : f32
    %14 = vector.broadcast %cst_13 : f32 to vector<1x64xf32>
    %15 = arith.addf %14, %13 : vector<1x64xf32>
    %16 = arith.divf %14, %15 : vector<1x64xf32>
    %17 = vector.shape_cast %16 : vector<1x64xf32> to vector<1x64x1xf32>
    %18 = vector.broadcast %17 : vector<1x64x1xf32> to vector<1x64x256xf32>
    %19 = arith.mulf %0, %18 : vector<1x64x256xf32>
    %c0_14 = arith.constant 0 : index
    %c0_15 = arith.constant 0 : index
    %c0_16 = arith.constant 0 : index
    %20 = vector.load %arg6[%c0_14, %c0_15, %c0_16] : memref<1x64x256xf32, #tpu.memory_space<vmem>>, vector<1x64x256xf32>
    tpu.vector_store %arg6[%c0_14, %c0_15, %c0_16], %19 {strides = array<i32>} : memref<1x64x256xf32, #tpu.memory_space<vmem>>, vector<1x64x256xf32>,
    return
  }
  func.func @transform_0(%arg0: i32) -> (i32, i32, i32) {
    %c0_i32 = arith.constant 0 : i32
    %c0_i32_0 = arith.constant 0 : i32
    %c0_i32_1 = arith.constant 0 : i32
    return %arg0, %c0_i32, %c0_i32_0 : i32, i32, i32
  }
  func.func @transform_1(%arg0: i32) -> (i32, i32) {
    %c0_i32 = arith.constant 0 : i32
    %c0_i32_0 = arith.constant 0 : i32
    %c0_i32_1 = arith.constant 0 : i32
    return %c0_i32, %c0_i32_0 : i32, i32
  }
  func.func @transform_2(%arg0: i32) -> (i32, i32) {
    %c0_i32 = arith.constant 0 : i32
    %c0_i32_0 = arith.constant 0 : i32
    %c0_i32_1 = arith.constant 0 : i32
    return %c0_i32, %c0_i32_0 : i32, i32
  }
  func.func @transform_3(%arg0: i32) -> (i32, i32) {
    %c0_i32 = arith.constant 0 : i32
    %c0_i32_0 = arith.constant 0 : i32
    %c0_i32_1 = arith.constant 0 : i32
    return %c0_i32, %c0_i32_0 : i32, i32
  }
  func.func @transform_4(%arg0: i32) -> (i32, i32) {
    %c0_i32 = arith.constant 0 : i32
    %c0_i32_0 = arith.constant 0 : i32
    %c0_i32_1 = arith.constant 0 : i32
    return %c0_i32, %c0_i32_0 : i32, i32
  }
  func.func @transform_5(%arg0: i32) -> (i32, i32, i32) {
    %c0_i32 = arith.constant 0 : i32
    %c0_i32_0 = arith.constant 0 : i32
    %c0_i32_1 = arith.constant 0 : i32
    return %arg0, %c0_i32, %c0_i32_0 : i32, i32, i32
  }
}

</mosaic_0001>

<llo_original>
// kernel: tpu_custom_call.1
$region0: #{tpu_custom_call.1}
  #allocation0 [shape = 'u32[]', space=smem, size = 0x4, offset = 0x4, fixed_abs, tag = 'smem constant byte address 0x4 - core index']
  #allocation1 [shape = 'u32[72,128]{1,0:T(1,128)}', space=vmem, size = 0x9000, scoped, tag = 'internal scratch']
  %s0 = inlined_call_operand.hbm [shape: f32[2,64,256], index: 0, kind: input, shape index: {}]
  %s1 = inlined_call_operand.vmem [shape: f32[64,4], index: 1, kind: input, shape index: {}]
  %s2 = inlined_call_operand.vmem [shape: f32[1,4], index: 2, kind: input, shape index: {}]
  %s3 = inlined_call_operand.vmem [shape: f32[4,64], index: 3, kind: input, shape index: {}]
  %s4 = inlined_call_operand.vmem [shape: f32[1,64], index: 4, kind: input, shape index: {}]
  %s5 = inlined_call_operand.hbm [shape: f32[2,64,256], index: 5, kind: output, shape index: {}]
  %s6 = sld [smem:[#allocation0]]
  $region57: #{tpu_custom_call.1} parent=0
    _
  %s8 = ssub.s32 1, %s6
  %s9 = scalar_select 0, %s8, %s6
  $region1: #{tpu_custom_call.1} parent=0
    #allocation2 [shape = 'u8[131072]{0}', space=vmem, size = 0x20000, scoped, tag = 'input window, operand 0']
    #allocation3 [shape = 's32[2]{0}', space=sflag, size = 0x8, scoped, tag = 'scoped memory for tpu_custom_call.1']
    #allocation4 [shape = 's32[2]{0}', space=sflag, size = 0x8, scoped, tag = 'scoped memory for tpu_custom_call.1']
    #allocation5 [shape = 'u8[131072]{0}', space=vmem, size = 0x20000, scoped, tag = 'output window, operand 0']
    %10 = vsyncpa [#allocation3], 0
    %s11 = scalar_lea.sflag [#allocation3], 1
    %12 = vsyncpa %s11, 0
    %13 = vsyncpa [#allocation4], 0
    %s14 = scalar_lea.sflag [#allocation4], 1
    %15 = vsyncpa %s14, 0
    loop: start=0, step=1, limit=4
    $region2: #{tpu_custom_call.1} parent=1 // loop_pre_header
      _
    $region3: #{tpu_custom_call.1} parent=1 // loop_header
      %s17 = sphi 0, %s21
      %p18 = scmp.ge.s32.totalorder %s17, 4
      %s27 = sphi 0, %s29
      %s30 = sphi 0, %s27
      %s31 = sphi 0, %s30
      %s47 = sphi 0, %s31
      %s51 = sphi 0, %s51
      %s53 = sphi 0, %s51
      %s54 = sphi 0, %s53
      %s68 = sphi 0, %s54
      %s72 = sphi 0, %s72
      %s74 = sphi 0, %s72
      %s75 = sphi 0, %s74
      %s89 = sphi 0, %s75
      %s93 = sphi 0, %s93
      %s95 = sphi 0, %s93
      %s96 = sphi 0, %s95
      %s110 = sphi 0, %s96
      %s114 = sphi 0, %s114
      %s116 = sphi 0, %s114
      %s117 = sphi 0, %s116
      %s131 = sphi 0, %s117
      %s137 = sphi 0, %s139
      %s140 = sphi 0, %s137
      %s141 = sphi 0, %s140
      %s157 = sphi 0, %s141
    $region4: #{tpu_custom_call.1} parent=1 // loop_header_branch
      %20 = sbr.rel (%p18) target = $region8
    $region5: #{tpu_custom_call.1} parent=1 // loop_body
      %s22 = ssub.s32 %s17, 1
      %s23 = ssub.s32 %s17, 2
      %s24 = sadd.s32 %s17, 1
      %s25 = ssub.s32 %s17, %s24
      %p26 = scmp.eq.s32.totalorder %s25, 0
      %s28 = sadd.s32 %s27, 1
      %s29 = scalar_select %p26, %s27, %s28
      %p32 = pneg %p26
      %p33 = scmp.eq.s32.totalorder %s17, 1
      %p34 = por %p32, %p33
      %p35 = scmp.ne.s32.totalorder %s27, %s30
      %p36 = scmp.eq.s32.totalorder %s17, 0
      %p37 = por %p35, %p36
      %p38 = scmp.ne.s32.totalorder %s27, %s30
      %p39 = scmp.eq.s32.totalorder %s22, 1
      %p40 = por %p38, %p39
      %p41 = scmp.ne.s32.totalorder %s30, %s31
      %p42 = scmp.eq.s32.totalorder %s22, 0
      %p43 = por %p41, %p42
      %p44 = scmp.ne.s32.totalorder %s30, %s31
      %p45 = scmp.eq.s32.totalorder %s23, 1
      %p46 = por %p44, %p45
      %p48 = scmp.ne.s32.totalorder %s31, %s47
      %p49 = scmp.eq.s32.totalorder %s23, 0
      %p50 = por %p48, %p49
      %s52 = sadd.s32 %s51, 1
      %p55 = scmp.eq.s32.totalorder %s17, 1
      %p56 = scmp.ne.s32.totalorder %s51, %s53
      %p57 = scmp.eq.s32.totalorder %s17, 0
      %p58 = por %p56, %p57
      %p59 = scmp.ne.s32.totalorder %s51, %s53
      %p60 = scmp.eq.s32.totalorder %s22, 1
      %p61 = por %p59, %p60
      %p62 = scmp.ne.s32.totalorder %s53, %s54
      %p63 = scmp.eq.s32.totalorder %s22, 0
      %p64 = por %p62, %p63
      %p65 = scmp.ne.s32.totalorder %s53, %s54
      %p66 = scmp.eq.s32.totalorder %s23, 1
      %p67 = por %p65, %p66
      %p69 = scmp.ne.s32.totalorder %s54, %s68
      %p70 = scmp.eq.s32.totalorder %s23, 0
      %p71 = por %p69, %p70
      %s73 = sadd.s32 %s72, 1
      %p76 = scmp.eq.s32.totalorder %s17, 1
      %p77 = scmp.ne.s32.totalorder %s72, %s74
      %p78 = scmp.eq.s32.totalorder %s17, 0
      %p79 = por %p77, %p78
      %p80 = scmp.ne.s32.totalorder %s72, %s74
      %p81 = scmp.eq.s32.totalorder %s22, 1
      %p82 = por %p80, %p81
      %p83 = scmp.ne.s32.totalorder %s74, %s75
      %p84 = scmp.eq.s32.totalorder %s22, 0
      %p85 = por %p83, %p84
      %p86 = scmp.ne.s32.totalorder %s74, %s75
      %p87 = scmp.eq.s32.totalorder %s23, 1
      %p88 = por %p86, %p87
      %p90 = scmp.ne.s32.totalorder %s75, %s89
      %p91 = scmp.eq.s32.totalorder %s23, 0
      %p92 = por %p90, %p91
      %s94 = sadd.s32 %s93, 1
      %p97 = scmp.eq.s32.totalorder %s17, 1
      %p98 = scmp.ne.s32.totalorder %s93, %s95
      %p99 = scmp.eq.s32.totalorder %s17, 0
      %p100 = por %p98, %p99
      %p101 = scmp.ne.s32.totalorder %s93, %s95
      %p102 = scmp.eq.s32.totalorder %s22, 1
      %p103 = por %p101, %p102
      %p104 = scmp.ne.s32.totalorder %s95, %s96
      %p105 = scmp.eq.s32.totalorder %s22, 0
      %p106 = por %p104, %p105
      %p107 = scmp.ne.s32.totalorder %s95, %s96
      %p108 = scmp.eq.s32.totalorder %s23, 1
      %p109 = por %p107, %p108
      %p111 = scmp.ne.s32.totalorder %s96, %s110
      %p112 = scmp.eq.s32.totalorder %s23, 0
      %p113 = por %p111, %p112
      %s115 = sadd.s32 %s114, 1
      %p118 = scmp.eq.s32.totalorder %s17, 1
      %p119 = scmp.ne.s32.totalorder %s114, %s116
      %p120 = scmp.eq.s32.totalorder %s17, 0
      %p121 = por %p119, %p120
      %p122 = scmp.ne.s32.totalorder %s114, %s116
      %p123 = scmp.eq.s32.totalorder %s22, 1
      %p124 = por %p122, %p123
      %p125 = scmp.ne.s32.totalorder %s116, %s117
      %p126 = scmp.eq.s32.totalorder %s22, 0
      %p127 = por %p125, %p126
      %p128 = scmp.ne.s32.totalorder %s116, %s117
      %p129 = scmp.eq.s32.totalorder %s23, 1
      %p130 = por %p128, %p129
      %p132 = scmp.ne.s32.totalorder %s117, %s131
      %p133 = scmp.eq.s32.totalorder %s23, 0
      %p134 = por %p132, %p133
      %s135 = ssub.s32 %s17, %s24
      %p136 = scmp.eq.s32.totalorder %s135, 0
      %s138 = sadd.s32 %s137, 1
      %s139 = scalar_select %p136, %s137, %s138
      %p142 = pneg %p136
      %p143 = scmp.eq.s32.totalorder %s17, 1
      %p144 = por %p142, %p143
      %p145 = scmp.ne.s32.totalorder %s137, %s140
      %p146 = scmp.eq.s32.totalorder %s17, 0
      %p147 = por %p145, %p146
      %p148 = scmp.ne.s32.totalorder %s137, %s140
      %p149 = scmp.eq.s32.totalorder %s22, 1
      %p150 = por %p148, %p149
      %p151 = scmp.ne.s32.totalorder %s140, %s141
      %p152 = scmp.eq.s32.totalorder %s22, 0
      %p153 = por %p151, %p152
      %p154 = scmp.ne.s32.totalorder %s140, %s141
      %p155 = scmp.eq.s32.totalorder %s23, 1
      %p156 = por %p154, %p155
      %p158 = scmp.ne.s32.totalorder %s141, %s157
      %p159 = scmp.eq.s32.totalorder %s23, 0
      %p160 = por %p158, %p159
      %p161 = scmp.le.s32.totalorder 1, %s17
      %p162 = scmp.lt.s32.totalorder %s17, 3
      %p163 = pnand %p161, %p162
      %p164 = pneg %p163
      // Predicated region
      $region9: #{tpu_custom_call.1} parent=5 // pred_check
        _
      $region10: #{tpu_custom_call.1} parent=5 // pred_check_branch
        %166 = sbr.rel (%p163) target = $region12
      $region11: #{tpu_custom_call.1} parent=5 // pred_region
        %s167 = ssub.s32 %s17, 1
        // Predicated region
        $region13: #{tpu_custom_call.1} parent=11 // pred_check
          %p168 = pneg %p64
        $region14: #{tpu_custom_call.1} parent=11 // pred_check_branch
          %170 = sbr.rel (%p168) target = $region16
        $region15: #{tpu_custom_call.1} parent=11 // pred_region
          _
        $region16: #{tpu_custom_call.1} parent=11 // pred_fallthru
          _
        // Predicated region
        $region17: #{tpu_custom_call.1} parent=11 // pred_check
          %p171 = pneg %p85
        $region18: #{tpu_custom_call.1} parent=11 // pred_check_branch
          %173 = sbr.rel (%p171) target = $region20
        $region19: #{tpu_custom_call.1} parent=11 // pred_region
          _
        $region20: #{tpu_custom_call.1} parent=11 // pred_fallthru
          _
        // Predicated region
        $region21: #{tpu_custom_call.1} parent=11 // pred_check
          %p174 = pneg %p106
        $region22: #{tpu_custom_call.1} parent=11 // pred_check_branch
          %176 = sbr.rel (%p174) target = $region24
        $region23: #{tpu_custom_call.1} parent=11 // pred_region
          _
        $region24: #{tpu_custom_call.1} parent=11 // pred_fallthru
          _
        // Predicated region
        $region25: #{tpu_custom_call.1} parent=11 // pred_check
          %p177 = pneg %p127
        $region26: #{tpu_custom_call.1} parent=11 // pred_check_branch
          %179 = sbr.rel (%p177) target = $region28
        $region27: #{tpu_custom_call.1} parent=11 // pred_region
          _
        $region28: #{tpu_custom_call.1} parent=11 // pred_fallthru
          _
      $region12: #{tpu_custom_call.1} parent=5 // pred_fallthru
        _
      %p180 = scmp.lt.s32.totalorder %s17, 2
      // Predicated region
      $region29: #{tpu_custom_call.1} parent=5 // pred_check
        %p181 = pneg %p180
      $region30: #{tpu_custom_call.1} parent=5 // pred_check_branch
        %183 = sbr.rel (%p181) target = $region32
      $region31: #{tpu_custom_call.1} parent=5 // pred_region
        // Predicated region
        $region33: #{tpu_custom_call.1} parent=31 // pred_check
          %p184 = pneg %p37
        $region34: #{tpu_custom_call.1} parent=31 // pred_check_branch
          %186 = sbr.rel (%p184) target = $region36
        $region35: #{tpu_custom_call.1} parent=31 // pred_region
          %s187 = sand.u32 %s27, 1
          %s188 = scalar_lea.sflag [#allocation3], %s187
          %s189 = sand.u32 %s27, 1
          %s190 = smul.addr %s189, 128
          %s191 = scalar_lea.vmem [#allocation2], %s190
          %193 = vsyncadd %s188, 0
          %s194 = smul.addr %s17, 16
          %s195 = smul.addr %s194, 8
          %s196 = scalar_lea.hbm %s0, %s195
          %s197 = sshll.u32 %s196, 4
          %s198 = int_to_ptr.hbm [resolvable:$true] %s197
          %s199 = sshll.u32 %s191, 4
          %s200 = int_to_ptr.vmem [resolvable:$true] %s199
          %205 = dma.hbm_to_vmem [thread:$0]  %s198, 2048, %s200, %s188, 256, 256, 16
        $region36: #{tpu_custom_call.1} parent=31 // pred_fallthru
          _
      $region32: #{tpu_custom_call.1} parent=5 // pred_fallthru
        _
      %p206 = scmp.le.s32.totalorder 1, %s17
      %p207 = scmp.lt.s32.totalorder %s17, 3
      %p208 = pnand %p206, %p207
      %p209 = pneg %p208
      // Predicated region
      $region37: #{tpu_custom_call.1} parent=5 // pred_check
        _
      $region38: #{tpu_custom_call.1} parent=5 // pred_check_branch
        %211 = sbr.rel (%p208) target = $region40
      $region39: #{tpu_custom_call.1} parent=5 // pred_region
        %s212 = ssub.s32 %s17, 1
        %s213 = sand.u32 %s30, 1
        %s214 = scalar_lea.sflag [#allocation3], %s213
        %s215 = sand.u32 %s30, 1
        %s216 = smul.addr %s215, 128
        %s217 = scalar_lea.vmem [#allocation2], %s216
        // Predicated region
        $region41: #{tpu_custom_call.1} parent=39 // pred_check
          %p218 = pneg %p43
        $region42: #{tpu_custom_call.1} parent=39 // pred_check_branch
          %220 = sbr.rel (%p218) target = $region44
        $region43: #{tpu_custom_call.1} parent=39 // pred_region
          %222 = dma.done %s214, 2048
        $region44: #{tpu_custom_call.1} parent=39 // pred_fallthru
          _
        %s223 = sand.u32 %s30, 1
        %s224 = scalar_lea.sflag [#allocation3], %s223
        %s225 = sand.u32 %s30, 1
        %s226 = smul.addr %s225, 128
        %s227 = scalar_lea.vmem [#allocation2], %s226
        %p228 = pneg %p43
        %p229 = pneg %p40
        %p230 = pneg %p64
        %p231 = pneg %p61
        %p232 = pneg %p85
        %p233 = pneg %p82
        %p234 = pneg %p106
        %p235 = pneg %p103
        %p236 = pneg %p127
        %p237 = pneg %p124
        %p238 = pneg %p153
        %p239 = pneg %p150
        %s240 = sand.u32 %s140, 1
        %s241 = scalar_lea.sflag [#allocation4], %s240
        %s242 = sand.u32 %s140, 1
        %s243 = smul.addr %s242, 128
        %s244 = scalar_lea.vmem [#allocation5], %s243
        %v245 = vld [vmem:[%s217] sm:$0xff]
        %v246 = vld [vmem:[%s217 + $0x8] sm:$0xff]
        %v247 = vld [vmem:[%s217 + $0x10] sm:$0xff]
        %v248 = vld [vmem:[%s217 + $0x18] sm:$0xff]
        %v249 = vld [vmem:[%s217 + $0x20] sm:$0xff]
        %v250 = vld [vmem:[%s217 + $0x28] sm:$0xff]
        %v251 = vld [vmem:[%s217 + $0x30] sm:$0xff]
        %v252 = vld [vmem:[%s217 + $0x38] sm:$0xff]
        %v253 = vld [vmem:[%s217 + $0x40] sm:$0xff]
        %v254 = vld [vmem:[%s217 + $0x48] sm:$0xff]
        %v255 = vld [vmem:[%s217 + $0x50] sm:$0xff]
        %v256 = vld [vmem:[%s217 + $0x58] sm:$0xff]
        %v257 = vld [vmem:[%s217 + $0x60] sm:$0xff]
        %v258 = vld [vmem:[%s217 + $0x68] sm:$0xff]
        %v259 = vld [vmem:[%s217 + $0x70] sm:$0xff]
        %v260 = vld [vmem:[%s217 + $0x78] sm:$0xff]
        %v261 = vadd.f32 %v245, %v246
        %262 = vadd.xlane.f32.xlu0 %v261
        %v263 = vpop.xlane.xlu0 %262
        %v264 = vadd.f32 %v247, %v248
        %265 = vadd.xlane.f32.xlu0 %v264
        %v266 = vpop.xlane.xlu0 %265
        %v267 = vadd.f32 %v249, %v250
        %268 = vadd.xlane.f32.xlu0 %v267
        %v269 = vpop.xlane.xlu0 %268
        %v270 = vadd.f32 %v251, %v252
        %271 = vadd.xlane.f32.xlu0 %v270
        %v272 = vpop.xlane.xlu0 %271
        %v273 = vadd.f32 %v253, %v254
        %274 = vadd.xlane.f32.xlu0 %v273
        %v275 = vpop.xlane.xlu0 %274
        %v276 = vadd.f32 %v255, %v256
        %277 = vadd.xlane.f32.xlu0 %v276
        %v278 = vpop.xlane.xlu0 %277
        %v279 = vadd.f32 %v257, %v258
        %280 = vadd.xlane.f32.xlu0 %v279
        %v281 = vpop.xlane.xlu0 %280
        %v282 = vadd.f32 %v259, %v260
        %283 = vadd.xlane.f32.xlu0 %v282
        %v284 = vpop.xlane.xlu0 %283
        %v285 = vld [vmem:[%s1] sm:$0xff]
        %v286 = vld [vmem:[%s1 + $0x8] sm:$0xff]
        %v287 = vld [vmem:[%s1 + $0x10] sm:$0xff]
        %v288 = vld [vmem:[%s1 + $0x18] sm:$0xff]
        %v289 = vld [vmem:[%s1 + $0x20] sm:$0xff]
        %v290 = vld [vmem:[%s1 + $0x28] sm:$0xff]
        %v291 = vld [vmem:[%s1 + $0x30] sm:$0xff]
        %v292 = vld [vmem:[%s1 + $0x38] sm:$0xff]
        %v293 = vld [vmem:[%s2] sm:$0x1]
        %v302 = vlaneseq
        %v303 = vand.u32 %v302, 127
        %v304 = vperm.slane %v263, %v303
        %v305 = vadd.s32 %v303, 4294967288
        %v306 = vperm.slane %v266, %v305
        %vm307 = vcmask 130112
        %v308 = vsel %vm307, %v306, %v304
        %v309 = vadd.s32 %v303, 4294967280
        %v310 = vperm.slane %v269, %v309
        %vm311 = vcmask 195712
        %v312 = vsel %vm311, %v310, %v308
        %v313 = vadd.s32 %v303, 4294967272
        %v314 = vperm.slane %v272, %v313
        %vm315 = vcmask 261312
        %v316 = vsel %vm315, %v314, %v312
        %v317 = vadd.s32 %v303, 4294967264
        %v318 = vperm.slane %v275, %v317
        %vm319 = vcmask 326912
        %v320 = vsel %vm319, %v318, %v316
        %v321 = vadd.s32 %v303, 4294967256
        %v322 = vperm.slane %v278, %v321
        %vm323 = vcmask 392512
        %v324 = vsel %vm323, %v322, %v320
        %v325 = vadd.s32 %v303, 4294967248
        %v326 = vperm.slane %v281, %v325
        %vm327 = vcmask 458112
        %v328 = vsel %vm327, %v326, %v324
        %v329 = vadd.s32 %v303, 4294967240
        %v330 = vperm.slane %v284, %v329
        %vm331 = vcmask 523712
        %v332 = vsel %vm331, %v330, %v328
        %vm333 = vcmask 523264
        %v334 = vsel %vm333, %v332, 0
        %336 = vmatpush.msra.mxu0 0.0
        %337 = vmatpush.msra.mxu0 0.0
        %338 = vmatpush.msra.mxu0 0.0
        %339 = vmatpush.msra.mxu0 0.0
        %340 = vmatpush.msra.mxu0 0.0
        %341 = vmatpush.msra.mxu0 0.0
        %342 = vmatpush.msra.mxu0 0.0
        %343 = vmatpush.msra.mxu0 0.0
        %344 = vmatpush.msra.mxu0 %v292
        %345 = vmatpush.msra.mxu0 %v291
        %346 = vmatpush.msra.mxu0 %v290
        %347 = vmatpush.msra.mxu0 %v289
        %348 = vmatpush.msra.mxu0 %v288
        %349 = vmatpush.msra.mxu0 %v287
        %350 = vmatpush.msra.mxu0 %v286
        %351 = vmatpush.msra.mxu0 %v285
        %352 = vmatmul.f32.gmra.mxu0 %v334
        %v353 = vpop.f32.mrf.mxu0
        %v354 = vadd.f32 %v293, %v353
        %355 = vdwg.mxu0
        %v356 = vmax.f32 %v354, 0.0
        %v357 = vld [vmem:[%s3] sm:$0xf]
        %v358 = vld [vmem:[%s4] sm:$0x1]
        %vm359 = vcmask 31744
        %v361 = vsel %vm359, %v356, 0
        %vm363 = vcmask 1043456
        %v365 = vsel %vm363, %v357, 0
        %367 = vmatpush.msra.mxu0 0.0
        %368 = vmatpush.msra.mxu0 0.0
        %369 = vmatpush.msra.mxu0 0.0
        %370 = vmatpush.msra.mxu0 0.0
        %371 = vmatpush.msra.mxu0 0.0
        %372 = vmatpush.msra.mxu0 0.0
        %373 = vmatpush.msra.mxu0 0.0
        %374 = vmatpush.msra.mxu0 0.0
        %375 = vmatpush.msra.mxu0 0.0
        %376 = vmatpush.msra.mxu0 0.0
        %377 = vmatpush.msra.mxu0 0.0
        %378 = vmatpush.msra.mxu0 0.0
        %379 = vmatpush.msra.mxu0 0.0
        %380 = vmatpush.msra.mxu0 0.0
        %381 = vmatpush.msra.mxu0 0.0
        %382 = vmatpush.msra.mxu0 %v365
        %383 = vmatmul.f32.gmra.mxu0 %v361
        %v384 = vpop.f32.mrf.mxu0
        %v385 = vadd.f32 %v358, %v384
        %386 = vdwg.mxu0
        %v387 = vxor.u32 %v385, 2147483648
        %v388 = vmul.f32 %v387, 1.442695
        %v389 = vpow.pop %v388
        %v390 = vadd.f32 %v389, 1.0
        %v391 = vrcp.pop %v390
        %v392 = vmul.f32 %v390, %v391
        %v393 = vsub.f32 1.0, %v392
        %v394 = vmul.f32 %v391, %v393
        %v395 = vadd.f32 %v391, %v394
        %vm396 = vweird.f32 %v390
        %vm397 = vweird.f32 %v391
        %vm398 = vmor %vm396, %vm397
        %v399 = vsel %vm398, %v391, %v395
        %v400 = vand.u32 2147483647, %v390
        %vm401 = vcmp.eq.f32.partialorder %v400, 8.507059e+37
        %v402 = vand.u32 %v390, 2147483648
        %v403 = vor.u32 1.1754944e-38, %v402
        %v404 = vsel %vm401, %v403, %v399
        %v405 = vmul.f32 1.0, %v404
        %v406 = vperm.slane %v405, 0
        %v407 = vlaneseq
        %v408 = vshrl.u32 %v407, 7
        %410 = vset.pattern.permute.xlu0 %v408
        %411 = vperm.xlu0 %410, %v406
        %v412 = vpop.permute.xlu0 %411
        %v413 = vlaneseq
        %v414 = vshrl.u32 %v413, 7
        %v415 = vadd.s32 %v414, 8
        %416 = vset.pattern.permute.xlu0 %v415
        %417 = vperm.xlu0 %416, %v406
        %v418 = vpop.permute.xlu0 %417
        %v419 = vlaneseq
        %v420 = vshrl.u32 %v419, 7
        %v421 = vadd.s32 %v420, 16
        %422 = vset.pattern.permute.xlu0 %v421
        %423 = vperm.xlu0 %422, %v406
        %v424 = vpop.permute.xlu0 %423
        %v425 = vlaneseq
        %v426 = vshrl.u32 %v425, 7
        %v427 = vadd.s32 %v426, 24
        %428 = vset.pattern.permute.xlu0 %v427
        %429 = vperm.xlu0 %428, %v406
        %v430 = vpop.permute.xlu0 %429
        %v431 = vlaneseq
        %v432 = vshrl.u32 %v431, 7
        %v433 = vadd.s32 %v432, 32
        %434 = vset.pattern.permute.xlu0 %v433
        %435 = vperm.xlu0 %434, %v406
        %v436 = vpop.permute.xlu0 %435
        %v437 = vlaneseq
        %v438 = vshrl.u32 %v437, 7
        %v439 = vadd.s32 %v438, 40
        %440 = vset.pattern.permute.xlu0 %v439
        %441 = vperm.xlu0 %440, %v406
        %v442 = vpop.permute.xlu0 %441
        %v443 = vlaneseq
        %v444 = vshrl.u32 %v443, 7
        %v445 = vadd.s32 %v444, 48
        %446 = vset.pattern.permute.xlu0 %v445
        %447 = vperm.xlu0 %446, %v406
        %v448 = vpop.permute.xlu0 %447
        %v449 = vlaneseq
        %v450 = vshrl.u32 %v449, 7
        %v451 = vadd.s32 %v450, 56
        %452 = vset.pattern.permute.xlu0 %v451
        %453 = vperm.xlu0 %452, %v406
        %v454 = vpop.permute.xlu0 %453
        %v455 = vmul.f32 %v245, %v412
        %v456 = vmul.f32 %v246, %v412
        %v457 = vmul.f32 %v247, %v418
        %v458 = vmul.f32 %v248, %v418
        %v459 = vmul.f32 %v249, %v424
        %v460 = vmul.f32 %v250, %v424
        %v461 = vmul.f32 %v251, %v430
        %v462 = vmul.f32 %v252, %v430
        %v463 = vmul.f32 %v253, %v436
        %v464 = vmul.f32 %v254, %v436
        %v465 = vmul.f32 %v255, %v442
        %v466 = vmul.f32 %v256, %v442
        %v467 = vmul.f32 %v257, %v448
        %v468 = vmul.f32 %v258, %v448
        %v469 = vmul.f32 %v259, %v454
        %v470 = vmul.f32 %v260, %v454
        %471 = vst [vmem:[%s244] sm:$0xff] %v455
        %472 = vst [vmem:[%s244 + $0x8] sm:$0xff] %v456
        %473 = vst [vmem:[%s244 + $0x10] sm:$0xff] %v457
        %474 = vst [vmem:[%s244 + $0x18] sm:$0xff] %v458
        %475 = vst [vmem:[%s244 + $0x20] sm:$0xff] %v459
        %476 = vst [vmem:[%s244 + $0x28] sm:$0xff] %v460
        %477 = vst [vmem:[%s244 + $0x30] sm:$0xff] %v461
        %478 = vst [vmem:[%s244 + $0x38] sm:$0xff] %v462
        %479 = vst [vmem:[%s244 + $0x40] sm:$0xff] %v463
        %480 = vst [vmem:[%s244 + $0x48] sm:$0xff] %v464
        %481 = vst [vmem:[%s244 + $0x50] sm:$0xff] %v465
        %482 = vst [vmem:[%s244 + $0x58] sm:$0xff] %v466
        %483 = vst [vmem:[%s244 + $0x60] sm:$0xff] %v467
        %484 = vst [vmem:[%s244 + $0x68] sm:$0xff] %v468
        %485 = vst [vmem:[%s244 + $0x70] sm:$0xff] %v469
        %486 = vst [vmem:[%s244 + $0x78] sm:$0xff] %v470
        %s487 = sand.u32 %s140, 1
        %s488 = scalar_lea.sflag [#allocation4], %s487
        %s489 = sand.u32 %s140, 1
        %s490 = smul.addr %s489, 128
        %s491 = scalar_lea.vmem [#allocation5], %s490
        // Predicated region
        $region45: #{tpu_custom_call.1} parent=39 // pred_check
          %p492 = pneg %p150
        $region46: #{tpu_custom_call.1} parent=39 // pred_check_branch
          %494 = sbr.rel (%p492) target = $region48
        $region47: #{tpu_custom_call.1} parent=39 // pred_region
          %496 = vsyncadd %s488, 0
          %s497 = smul.addr %s22, 16
          %s498 = smul.addr %s497, 8
          %s499 = scalar_lea.hbm %s5, %s498
          %s500 = sshll.u32 %s491, 4
          %s501 = int_to_ptr.vmem [resolvable:$true] %s500
          %s502 = sshll.u32 %s499, 4
          %s503 = int_to_ptr.hbm [resolvable:$true] %s502
          %508 = dma.vmem_to_hbm [thread:$0]  %s501, 2048, %s503, %s488, 256, 256, 16
        $region48: #{tpu_custom_call.1} parent=39 // pred_fallthru
          _
      $region40: #{tpu_custom_call.1} parent=5 // pred_fallthru
        _
      %p509 = scmp.le.s32.totalorder 2, %s17
      // Predicated region
      $region49: #{tpu_custom_call.1} parent=5 // pred_check
        %p510 = pneg %p509
      $region50: #{tpu_custom_call.1} parent=5 // pred_check_branch
        %512 = sbr.rel (%p510) target = $region52
      $region51: #{tpu_custom_call.1} parent=5 // pred_region
        %s513 = ssub.s32 %s17, 2
        // Predicated region
        $region53: #{tpu_custom_call.1} parent=51 // pred_check
          %p514 = pneg %p156
        $region54: #{tpu_custom_call.1} parent=51 // pred_check_branch
          %516 = sbr.rel (%p514) target = $region56
        $region55: #{tpu_custom_call.1} parent=51 // pred_region
          %s517 = sand.u32 %s141, 1
          %s518 = scalar_lea.sflag [#allocation4], %s517
          %s519 = sand.u32 %s141, 1
          %s520 = smul.addr %s519, 128
          %s521 = scalar_lea.vmem [#allocation5], %s520
          %523 = dma.done %s518, 2048
        $region56: #{tpu_custom_call.1} parent=51 // pred_fallthru
          _
      $region52: #{tpu_custom_call.1} parent=5 // pred_fallthru
        _
    $region6: #{tpu_custom_call.1} parent=1 // loop_footer
      %s21 = sadd.s32 1, %s17
    $region7: #{tpu_custom_call.1} parent=1 // loop_footer_branch
      %16 = sbr.rel target = $region3
    $region8: #{tpu_custom_call.1} parent=1 // loop_exit
      _
    %524 = vsyncpa [#allocation3], 1
    %s525 = scalar_lea.sflag [#allocation3], 1
    %526 = vsyncpa %s525, 1
    %527 = vsyncpa [#allocation4], 1
    %s528 = scalar_lea.sflag [#allocation4], 1
    %529 = vsyncpa %s528, 1

</llo_original>
